<compile_context>
chip_gen: v7x
topology: tpu7x:2x2x1
jax: 0.10.0
libtpu: 0.0.40
codegen_flags: <defaults>
</compile_context>

<pallas_src>
import functools
import math

import jax
import jax.numpy as jnp
from jax.experimental import pallas as pl
from jax.experimental.pallas import tpu as pltpu


_LANES = 128
_SUBLANES = 8
_MAX_TN = 4096        # lane-tile cap (multiple of 128)
_TARGET_COLS = 512    # merge trailing dims until the lane axis is at least this wide


def _round_up(x, m):
    return (x + m - 1) // m * m


def _vmem_budget():
    """(tile_budget_bytes, vmem_limit_bytes) per TPU generation."""
    try:
        cap = int(pltpu.get_tpu_info().vmem_capacity_bytes)
    except Exception:  # conservative fallback if the query is unavailable
        cap = 0
    if cap >= 128 * 1024 * 1024:        # v5e / v6e: 128 MiB physical -> bigger tiles
        return 8 * 1024 * 1024, 64 * 1024 * 1024
    # v7x (64 MiB physical per TC) or unknown: conservative, still 4 MiB tiles
    return 4 * 1024 * 1024, 32 * 1024 * 1024


def _collapse_2d(shape):
    """Split `shape` row-major into (rows, cols), cols = product of trailing dims
    (a free, contiguous reshape), merged until cols >= _TARGET_COLS or exhausted."""
    dims = [int(d) for d in shape] or [1]
    cols, i = 1, len(dims)
    while i > 0 and cols < _TARGET_COLS:
        i -= 1
        cols *= dims[i]
    rows = int(math.prod(dims[:i]))
    return max(rows, 1), max(cols, 1)


def _tile_dims(rows, cols, budget_bytes):
    """Pick (tm, tn): tn multiple of 128 (or == full cols), tm multiple of 8 (or ==
    full rows), padded-layout f32 footprint ~= budget_bytes. Tiles never exceed the
    array extent, so only trailing partial blocks can occur (masked in-kernel)."""
    budget_elems = max(budget_bytes // 4, _SUBLANES * _LANES)
    tn = cols if cols <= _MAX_TN else _MAX_TN
    tn_pad = _round_up(tn, _LANES)                      # lane-padded layout width
    tm_budget = max((budget_elems // tn_pad) // _SUBLANES * _SUBLANES, _SUBLANES)
    tm = rows if rows <= tm_budget else tm_budget
    return tm, tn


# --------------------------------------------------------------------------
# Pass 1: tiled reduction  sum(BCE(sigmoid(logits), labels)) -> per-row-block partials
# --------------------------------------------------------------------------
def _bce_sum_kernel(logits_ref, labels_ref, out_ref, acc_ref, *,
                    tm, tn, rows, cols, need_mask):
    j = pl.program_id(1)

    @pl.when(j == 0)
    def _():
        acc_ref[0, 0] = jnp.float32(0.0)

    x = logits_ref[...].astype(jnp.float32)
    y = labels_ref[...].astype(jnp.float32)
    # sigmoid(x) == 0.5*(tanh(x/2)+1): one EUP op instead of exp+reciprocal.
    p = 0.5 * (jnp.tanh(0.5 * x) + 1.0)
    # PyTorch-faithful BCELoss: both log terms clamped at -100.
    # TODO(synk): the log(1-p) = log(p) - x rewrite (one fewer EUP log, v7x) is not
    # bit-faithful to the clamped path for saturated logits, so it is not used.
    log_p = jnp.maximum(jnp.log(p), -100.0)
    log_1mp = jnp.maximum(jnp.log(1.0 - p), -100.0)
    bce = -(y * log_p + (1.0 - y) * log_1mp)

    if need_mask:  # only compiled in when the grid has partial edge blocks
        i = pl.program_id(0)
        row_ids = i * tm + jax.lax.broadcasted_iota(jnp.int32, (tm, tn), 0)
        col_ids = j * tn + jax.lax.broadcasted_iota(jnp.int32, (tm, tn), 1)
        bce = jnp.where((row_ids < rows) & (col_ids < cols), bce, 0.0)

    acc_ref[0, 0] += jnp.sum(bce)

    @pl.when(j == pl.num_programs(1) - 1)
    def _():
        out_ref[0, 0] = acc_ref[0, 0]


def _bce_mean(logits2d, labels2d, tm, tn, n_true, vmem_limit):
    rows, cols = (int(d) for d in logits2d.shape)
    grid = (pl.cdiv(rows, tm), pl.cdiv(cols, tn))
    need_mask = (rows % tm != 0) or (cols % tn != 0)
    partials = pl.pallas_call(
        functools.partial(_bce_sum_kernel, tm=tm, tn=tn, rows=rows, cols=cols,
                          need_mask=need_mask),
        out_shape=jax.ShapeDtypeStruct((grid[0], 1), jnp.float32),
        grid_spec=pltpu.PrefetchScalarGridSpec(
            num_scalar_prefetch=0,
            grid=grid,
            in_specs=[
                pl.BlockSpec((tm, tn), lambda i, j: (i, j)),
                pl.BlockSpec((tm, tn), lambda i, j: (i, j)),
            ],
            out_specs=pl.BlockSpec((1, 1), lambda i, j: (i, 0),
                                   memory_space=pltpu.SMEM),
            scratch_shapes=[pltpu.SMEM((1, 1), jnp.float32)],
        ),
        compiler_params=pltpu.CompilerParams(
            # Row-block axis is parallel (megacore on v7x); the reduction axis j is
            # arbitrary because the per-row-block output block is revisited along it.
            dimension_semantics=("parallel", "arbitrary"),
            vmem_limit_bytes=vmem_limit,
        ),
    )(logits2d, labels2d)
    # Tiny finalize in XLA: sum the per-row-block partials, divide by the true count.
    return jnp.sum(partials) / jnp.float32(n_true)


# --------------------------------------------------------------------------
# Pass 2 (only with class_weights): out = (1-sigmoid(x))**gamma * (cw[row] * ce)
# --------------------------------------------------------------------------
def _weighted_loss_kernel(logits_ref, cw_ref, out_ref, *, gamma):
    x = logits_ref[...].astype(jnp.float32)
    # 1 - sigmoid(x) == 0.5*(1 - tanh(x/2)): one EUP op.
    q = 0.5 * (1.0 - jnp.tanh(0.5 * x))
    g = float(gamma)
    if g.is_integer() and 0.0 <= g <= 16.0:
        # Integer gamma: repeated multiply on the VPU instead of pow (2 EUP ops/elem).
        gi = int(g)
        w = jnp.ones_like(q) if gi == 0 else q
        for _ in range(max(gi - 1, 0)):
            w = w * q
    else:
        w = q ** jnp.float32(g)
    # cw_ref already carries ce_loss folded in (done once in XLA on a (rows, 1) column).
    out_ref[...] = (w * cw_ref[...].astype(jnp.float32)).astype(out_ref.dtype)


# --------------------------------------------------------------------------
# Module wrapper
# --------------------------------------------------------------------------
class FocalLoss:
    """JAX/Pallas port of the PyTorch FocalLoss module (forward only)."""

    def __init__(self, gamma=2.0, class_weights=None):
        self.gamma = float(gamma)
        self.class_weights = class_weights

    def __call__(self, logits, labels):
        if self.class_weights is None:
            return self._mean_bce_only(logits, labels)
        return self._weighted(logits, labels)

    # -- class_weights is None: loss is just the scalar mean BCE -------------
    def _mean_bce_only(self, logits, labels):
        n = logits.size
        rows, cols = _collapse_2d(logits.shape)
        tile_budget, vmem_limit = _vmem_budget()
        tm, tn = _tile_dims(rows, cols, tile_budget)
        lg2d = logits.reshape(rows, cols)     # free reshape, no padding copy
        lb2d = labels.reshape(rows, cols)
        return _bce_mean(lg2d, lb2d, tm, tn, n, vmem_limit)

    # -- class_weights given: fused (1-p)**gamma * (class_weight * ce) -------
    def _weighted(self, logits, labels):
        if logits.ndim < 2:
            raise ValueError("class_weights path expects (batch, channels, ...) logits")
        orig_shape = logits.shape
        out_dtype = logits.dtype
        n = logits.size
        B, C = int(orig_shape[0]), int(orig_shape[1])
        rows = B * C
        cols = int(math.prod(orig_shape[2:])) if logits.ndim > 2 else 1

        cw = jnp.asarray(self.class_weights, dtype=jnp.float32)
        if cw.size == 1:
            per_channel = jnp.broadcast_to(cw.reshape(()), (C,))
        elif cw.size == C:
            per_channel = cw.reshape(C)
        else:
            # TODO(synk): arbitrary broadcastable class_weights shapes (e.g. spatial
            # weights) are not supported by the fused per-row-weight kernel.
            raise NotImplementedError(
                "class_weights must be a scalar or have exactly `channels` elements")

        tile_budget, vmem_limit = _vmem_budget()
        tm, tn = _tile_dims(rows, cols, tile_budget)
        lg2d = logits.reshape(rows, cols)     # free reshape, no padding copy
        lb2d = labels.reshape(rows, cols)

        # Pass 1: scalar mean BCE over the true elements.
        ce_loss = _bce_mean(lg2d, lb2d, tm, tn, n, vmem_limit)

        # ce folded into the tiny (rows, 1) class-weight column (never full-size).
        cw_rows = (jnp.tile(per_channel, B) * ce_loss).reshape(rows, 1)

        grid = (pl.cdiv(rows, tm), pl.cdiv(cols, tn))
        out2d = pl.pallas_call(
            functools.partial(_weighted_loss_kernel, gamma=self.gamma),
            out_shape=jax.ShapeDtypeStruct((rows, cols), out_dtype),  # unpadded output
            grid_spec=pltpu.PrefetchScalarGridSpec(
                num_scalar_prefetch=0,
                grid=grid,
                in_specs=[
                    pl.BlockSpec((tm, tn), lambda i, j: (i, j)),  # logits tile
                    pl.BlockSpec((tm, 1), lambda i, j: (i, 0)),   # ce-scaled class wts
                ],
                out_specs=pl.BlockSpec((tm, tn), lambda i, j: (i, j)),
            ),
            compiler_params=pltpu.CompilerParams(
                # Purely elementwise: both axes independent (megacore-friendly on v7x).
                dimension_semantics=("parallel", "parallel"),
                vmem_limit_bytes=vmem_limit,
            ),
        )(lg2d, cw_rows)

        return out2d.reshape(orig_shape)


# --------------------------------------------------------------------------
# Pure-JAX reference (matches PyTorch semantics)
# --------------------------------------------------------------------------
def _reference(logits, labels, gamma=2.0, class_weights=None):
    p = jax.nn.sigmoid(logits.astype(jnp.float32))
    y = labels.astype(jnp.float32)
    bce = -(y * jnp.maximum(jnp.log(p), -100.0)
            + (1.0 - y) * jnp.maximum(jnp.log(1.0 - p), -100.0))
    ce = jnp.mean(bce)
    if class_weights is None:
        return ce
    w = (1.0 - p) ** gamma * jnp.asarray(class_weights, jnp.float32)
    return ce * w


if __name__ == "__main__":
    key = jax.random.PRNGKey(0)
    k1, k2 = jax.random.split(key)

    # Small NCHW shapes consistent with a per-pixel multi-label logits tensor.
    B, C, H, W = 2, 4, 16, 16
    logits = jax.random.normal(k1, (B, C, H, W), dtype=jnp.float32)
    labels = jax.random.bernoulli(k2, p=0.5, shape=(B, C, H, W)).astype(jnp.float32)

    # Path 1: class_weights=None -> scalar mean BCE.
    loss = FocalLoss(gamma=2.0, class_weights=None)(logits, labels)
    loss = jax.block_until_ready(loss)
    ref = _reference(logits, labels)
    assert jnp.allclose(loss, ref, rtol=1e-5, atol=1e-5), (loss, ref)

    # Path 2: per-class weights shaped (1, C, 1, 1).
    class_weights = jnp.arange(1.0, C + 1.0, dtype=jnp.float32).reshape(1, C, 1, 1)
    loss_w = FocalLoss(gamma=2.0, class_weights=class_weights)(logits, labels)
    loss_w = jax.block_until_ready(loss_w)
    ref_w = _reference(logits, labels, gamma=2.0, class_weights=class_weights)
    assert loss_w.shape == (B, C, H, W)
    assert jnp.allclose(loss_w, ref_w, rtol=1e-5, atol=1e-5)

    # Ragged (non multiple-of-128) shapes exercise the in-kernel masking / edge blocks.
    k3, k4 = jax.random.split(k1)
    lg_r = jax.random.normal(k3, (2, 3, 7, 5), dtype=jnp.float32)
    lb_r = jax.random.bernoulli(k4, p=0.5, shape=(2, 3, 7, 5)).astype(jnp.float32)
    loss_r = jax.block_until_ready(FocalLoss(2.0, None)(lg_r, lb_r))
    assert jnp.allclose(loss_r, _reference(lg_r, lb_r), rtol=1e-5, atol=1e-5)

    cw_r = jnp.array([0.5, 1.0, 2.0], dtype=jnp.float32).reshape(1, 3, 1, 1)
    loss_rw = jax.block_until_ready(FocalLoss(2.0, cw_r)(lg_r, lb_r))
    assert jnp.allclose(loss_rw, _reference(lg_r, lb_r, 2.0, cw_r), rtol=1e-5, atol=1e-5)

    # Larger ragged-tiling case: cols > tile width with a partial trailing column block.
    k5, k6 = jax.random.split(k2)
    lg_big = jax.random.normal(k5, (2, 3, 40, 130), dtype=jnp.float32)
    lb_big = jax.random.bernoulli(k6, p=0.5, shape=(2, 3, 40, 130)).astype(jnp.float32)
    loss_big = jax.block_until_ready(FocalLoss(2.0, cw_r)(lg_big, lb_big))
    assert jnp.allclose(loss_big, _reference(lg_big, lb_big, 2.0, cw_r),
                        rtol=1e-5, atol=1e-5)

    print("KERNEL_OK")
</pallas_src>

<mosaic_0001>
module attributes {stable_mosaic.version = 11 : i64} {
  func.func @_bce_sum_kernel(%arg0: i32, %arg1: i32, %arg2: memref<2x1024xf32, #tpu.memory_space<vmem>>, %arg3: memref<2x1024xf32, #tpu.memory_space<vmem>>, %arg4: memref<1x1xf32, #tpu.memory_space<smem>>, %arg5: memref<1x1xf32, #tpu.memory_space<smem>>) attributes {dimension_semantics = [#tpu.dimension_semantics<parallel>, #tpu.dimension_semantics<arbitrary>], iteration_bounds = array<i64: 1, 1>, scalar_prefetch = 0 : i64, scratch_operands = 1 : i64, tpu.core_type = #tpu.core_type<tc>, window_params = [{transform_indices = @transform_0, window_bounds = array<i64: 2, 1024>}, {transform_indices = @transform_1, window_bounds = array<i64: 2, 1024>}, {transform_indices = @transform_2, window_bounds = array<i64: 1, 1>}]} {
    %c0_i32 = arith.constant 0 : i32
    %0 = arith.cmpi eq, %arg1, %c0_i32 : i32
    %1 = arith.extui %0 : i1 to i32
    %c0_i32_0 = arith.constant 0 : i32
    %2 = arith.cmpi ne, %1, %c0_i32_0 : i32
    scf.if %2 {
      %cst_18 = arith.constant 0.000000e+00 : f32
      %c0_19 = arith.constant 0 : index
      %c0_20 = arith.constant 0 : index
      %37 = memref.load %arg5[%c0_19, %c0_20] : memref<1x1xf32, #tpu.memory_space<smem>>
      memref.store %cst_18, %arg5[%c0_19, %c0_20] : memref<1x1xf32, #tpu.memory_space<smem>>
    } else {
    }
    %c0 = arith.constant 0 : index
    %c0_1 = arith.constant 0 : index
    %3 = vector.load %arg2[%c0, %c0_1] : memref<2x1024xf32, #tpu.memory_space<vmem>>, vector<2x1024xf32>
    %c0_2 = arith.constant 0 : index
    %c0_3 = arith.constant 0 : index
    %4 = vector.load %arg3[%c0_2, %c0_3] : memref<2x1024xf32, #tpu.memory_space<vmem>>, vector<2x1024xf32>
    %cst = arith.constant 5.000000e-01 : f32
    %5 = vector.broadcast %cst : f32 to vector<2x1024xf32>
    %6 = arith.mulf %5, %3 : vector<2x1024xf32>
    %7 = math.tanh %6 : vector<2x1024xf32>
    %cst_4 = arith.constant 1.000000e+00 : f32
    %8 = vector.broadcast %cst_4 : f32 to vector<2x1024xf32>
    %9 = arith.addf %7, %8 : vector<2x1024xf32>
    %cst_5 = arith.constant 5.000000e-01 : f32
    %10 = vector.broadcast %cst_5 : f32 to vector<2x1024xf32>
    %11 = arith.mulf %10, %9 : vector<2x1024xf32>
    %12 = math.log %11 : vector<2x1024xf32>
    %cst_6 = arith.constant -1.000000e+02 : f32
    %13 = vector.broadcast %cst_6 : f32 to vector<2x1024xf32>
    %14 = arith.maximumf %12, %13 : vector<2x1024xf32>
    %cst_7 = arith.constant 1.000000e+00 : f32
    %15 = vector.broadcast %cst_7 : f32 to vector<2x1024xf32>
    %16 = arith.subf %15, %11 : vector<2x1024xf32>
    %17 = math.log %16 : vector<2x1024xf32>
    %cst_8 = arith.constant -1.000000e+02 : f32
    %18 = vector.broadcast %cst_8 : f32 to vector<2x1024xf32>
    %19 = arith.maximumf %17, %18 : vector<2x1024xf32>
    %20 = arith.mulf %4, %14 : vector<2x1024xf32>
    %cst_9 = arith.constant 1.000000e+00 : f32
    %21 = vector.broadcast %cst_9 : f32 to vector<2x1024xf32>
    %22 = arith.subf %21, %4 : vector<2x1024xf32>
    %23 = arith.mulf %22, %19 : vector<2x1024xf32>
    %24 = arith.addf %20, %23 : vector<2x1024xf32>
    %cst_10 = arith.constant 0.000000e+00 : f32
    %25 = vector.broadcast %cst_10 : f32 to vector<2x1024xf32>
    %26 = arith.subf %25, %24 : vector<2x1024xf32>
    %c0_11 = arith.constant 0 : index
    %c0_12 = arith.constant 0 : index
    %27 = memref.load %arg5[%c0_11, %c0_12] : memref<1x1xf32, #tpu.memory_space<smem>>
    %28 = vector.shape_cast %26 : vector<2x1024xf32> to vector<1x2x1024xf32>
    %cst_13 = arith.constant dense<0.000000e+00> : vector<1xf32>
    %29 = vector.multi_reduction <add>, %28, %cst_13 [1, 2] : vector<1x2x1024xf32> to vector<1xf32>
    %30 = vector.shape_cast %29 : vector<1xf32> to vector<1x1x1xf32>
    %31 = vector.extract %30[0, 0, 0] : f32 from vector<1x1x1xf32>
    %32 = arith.addf %27, %31 : f32
    %c0_14 = arith.constant 0 : index
    %c0_15 = arith.constant 0 : index
    %33 = memref.load %arg5[%c0_14, %c0_15] : memref<1x1xf32, #tpu.memory_space<smem>>
    memref.store %32, %arg5[%c0_14, %c0_15] : memref<1x1xf32, #tpu.memory_space<smem>>
    %c0_i32_16 = arith.constant 0 : i32
    %34 = arith.cmpi eq, %arg1, %c0_i32_16 : i32
    %35 = arith.extui %34 : i1 to i32
    %c0_i32_17 = arith.constant 0 : i32
    %36 = arith.cmpi ne, %35, %c0_i32_17 : i32
    scf.if %36 {
      %c0_18 = arith.constant 0 : index
      %c0_19 = arith.constant 0 : index
      %37 = memref.load %arg5[%c0_18, %c0_19] : memref<1x1xf32, #tpu.memory_space<smem>>
      %c0_20 = arith.constant 0 : index
      %c0_21 = arith.constant 0 : index
      %38 = memref.load %arg4[%c0_20, %c0_21] : memref<1x1xf32, #tpu.memory_space<smem>>
      memref.store %37, %arg4[%c0_20, %c0_21] : memref<1x1xf32, #tpu.memory_space<smem>>
    } else {
    }
    return
  }
  func.func @transform_0(%arg0: i32, %arg1: i32) -> (i32, i32) {
    %c0_i32 = arith.constant 0 : i32
    return %arg0, %arg1 : i32, i32
  }
  func.func @transform_1(%arg0: i32, %arg1: i32) -> (i32, i32) {
    %c0_i32 = arith.constant 0 : i32
    return %arg0, %arg1 : i32, i32
  }
  func.func @transform_2(%arg0: i32, %arg1: i32) -> (i32, i32) {
    %c0_i32 = arith.constant 0 : i32
    %c0_i32_0 = arith.constant 0 : i32
    return %arg0, %c0_i32 : i32, i32
  }
}

</mosaic_0001>

<llo_original>
// kernel: tpu_custom_call.1
$region0: #{tpu_custom_call.1}
  #allocation0 [shape = 'u32[]', space=smem, size = 0x4, offset = 0x4, fixed_abs, tag = 'smem constant byte address 0x4 - core index']
  #allocation1 [shape = 'u32[144,128]{1,0:T(1,128)}', space=vmem, size = 0x12000, scoped, tag = 'internal scratch']
  #allocation2 [shape = 'f32[1,1]{1,0:T(1,128)}', space=smem, size = 0x200, scoped, tag = 'scratch operand']
  %s0 = inlined_call_operand.hbm [shape: f32[2,1024], index: 0, kind: input, shape index: {}]
  %s1 = inlined_call_operand.hbm [shape: f32[2,1024], index: 1, kind: input, shape index: {}]
  %s2 = inlined_call_operand.hbm [shape: f32[1,1], index: 2, kind: output, shape index: {}]
  %s3 = sld [smem:[#allocation0]]
  $region34: #{tpu_custom_call.1} parent=0
    _
  %s5 = ssub.s32 1, %s3
  %s6 = scalar_select 0, %s5, %s3
  $region1: #{tpu_custom_call.1} parent=0
    #allocation3 [shape = 'u8[8192]{0}', space=vmem, size = 0x2000, scoped, tag = 'input window, operand 0, single buffered']
    #allocation4 [shape = 's32[1]{0}', space=sflag, size = 0x4, scoped, tag = 'scoped memory for tpu_custom_call.1']
    #allocation5 [shape = 's32[1]{0}', space=sflag, size = 0x4, scoped, tag = 'scoped memory for tpu_custom_call.1']
    #allocation6 [shape = 'u8[8192]{0}', space=vmem, size = 0x2000, scoped, tag = 'input window, operand 1, single buffered']
    #allocation7 [shape = 's32[1]{0}', space=sflag, size = 0x4, scoped, tag = 'scoped memory for tpu_custom_call.1']
    #allocation8 [shape = 'u8[512]{0}', space=smem, size = 0x200, scoped, tag = 'output window, operand 0, single buffered']
    %7 = vsyncpa [#allocation4], 0
    %8 = vsyncpa [#allocation7], 0
    %9 = vsyncpa [#allocation5], 0
    // Predicated region
    $region2: #{tpu_custom_call.1} parent=1 // pred_check
      _
    $region3: #{tpu_custom_call.1} parent=1 // pred_check_branch
      %11 = sbr.rel (0) target = $region5
    $region4: #{tpu_custom_call.1} parent=1 // pred_region
      %s13 = ssub.s32 256, 256
      %14 = vsyncadd [#allocation4], %s13
      %s16 = sshll.u32 [#allocation3], 4
      %s17 = int_to_ptr.vmem [resolvable:$true] %s16
      %19 = dma.hbm_to_vmem [thread:$0]  %s0, 256, %s17, [#allocation4]
    $region5: #{tpu_custom_call.1} parent=1 // pred_fallthru
      _
    // Predicated region
    $region6: #{tpu_custom_call.1} parent=1 // pred_check
      _
    $region7: #{tpu_custom_call.1} parent=1 // pred_check_branch
      %21 = sbr.rel (0) target = $region9
    $region8: #{tpu_custom_call.1} parent=1 // pred_region
      %s23 = ssub.s32 256, 256
      %24 = vsyncadd [#allocation7], %s23
      %s26 = sshll.u32 [#allocation6], 4
      %s27 = int_to_ptr.vmem [resolvable:$true] %s26
      %29 = dma.hbm_to_vmem [thread:$0]  %s1, 256, %s27, [#allocation7]
    $region9: #{tpu_custom_call.1} parent=1 // pred_fallthru
      _
    // Predicated region
    $region10: #{tpu_custom_call.1} parent=1 // pred_check
      _
    $region11: #{tpu_custom_call.1} parent=1 // pred_check_branch
      %31 = sbr.rel (0) target = $region13
    $region12: #{tpu_custom_call.1} parent=1 // pred_region
      %32 = dma.done [#allocation4], 256
    $region13: #{tpu_custom_call.1} parent=1 // pred_fallthru
      _
    // Predicated region
    $region14: #{tpu_custom_call.1} parent=1 // pred_check
      _
    $region15: #{tpu_custom_call.1} parent=1 // pred_check_branch
      %34 = sbr.rel (0) target = $region17
    $region16: #{tpu_custom_call.1} parent=1 // pred_region
      %35 = dma.done [#allocation7], 256
    $region17: #{tpu_custom_call.1} parent=1 // pred_fallthru
      _
    %p36 = scmp.eq.s32.totalorder 0, 0
    // Predicated region
    $region18: #{tpu_custom_call.1} parent=1 // pred_check
      %p37 = pneg %p36
    $region19: #{tpu_custom_call.1} parent=1 // pred_check_branch
      %39 = sbr.rel (%p37) target = $region21
    $region20: #{tpu_custom_call.1} parent=1 // pred_region
      %s40 = scalar_lea.smem [#allocation2], 0
      %41 = sst [smem:[%s40]] 0.0
    $region21: #{tpu_custom_call.1} parent=1 // pred_fallthru
      _
    %v42 = vld [vmem:[#allocation3] sm:$0xff]
    %v43 = vld [vmem:[#allocation3 + $0x8] sm:$0xff]
    %v44 = vld [vmem:[#allocation6] sm:$0xff]
    %v45 = vld [vmem:[#allocation6 + $0x8] sm:$0xff]
    %v46 = vmul.f32 %v42, 0.5
    %v47 = vmul.f32 %v43, 0.5
    %v48 = vtanh.pop %v46
    %v49 = vtanh.pop %v47
    %v50 = vadd.f32 %v48, 1.0
    %v51 = vadd.f32 %v49, 1.0
    %v52 = vmul.f32 %v50, 0.5
    %v53 = vmul.f32 %v51, 0.5
    %v54 = vlog2.pop %v52
    %v55 = vmul.f32 %v54, 0.6931472
    %v56 = vlog2.pop %v53
    %v57 = vmul.f32 %v56, 0.6931472
    %v58 = vmax.f32 %v55, -100.0
    %v59 = vmax.f32 %v57, -100.0
    %v60 = vsub.f32 1.0, %v52
    %v61 = vsub.f32 1.0, %v53
    %v62 = vlog2.pop %v60
    %v63 = vmul.f32 %v62, 0.6931472
    %v64 = vlog2.pop %v61
    %v65 = vmul.f32 %v64, 0.6931472
    %v66 = vmax.f32 %v63, -100.0
    %v67 = vmax.f32 %v65, -100.0
    %v68 = vmul.f32 %v44, %v58
    %v69 = vmul.f32 %v45, %v59
    %v70 = vsub.f32 1.0, %v44
    %v71 = vsub.f32 1.0, %v45
    %v72 = vmul.f32 %v70, %v66
    %v73 = vmul.f32 %v71, %v67
    %v74 = vadd.f32 %v68, %v72
    %v75 = vadd.f32 %v69, %v73
    %v76 = vsub.f32 0.0, %v74
    %v77 = vsub.f32 0.0, %v75
    %s78 = sld [smem:[#allocation2]]
    %v81 = vcombine.high %v76, %v76
    %v83 = vunpack.c.l.s4 1983009808
    %v84 = vunpack.c.0.s8 %v83
    %v85 = vlaneseq
    %v86 = vshrl.u32 %v85, 7
    %v87 = vsub.s32 %v84, %v86
    %v88 = vrot.slane %v76, %v87
    %v90 = vunpack.c.l.s4 1983009808
    %v91 = vunpack.c.0.s8 %v90
    %v92 = vlaneseq
    %v93 = vshrl.u32 %v92, 7
    %v94 = vsub.s32 %v91, %v93
    %v95 = vrot.slane %v81, %v94
    %v96 = vcombine.high %v88, %v88
    %v97 = vcombine.high %v95, %v95
    %v98 = vcombine.high %v77, %v77
    %v100 = vunpack.c.l.s4 1983009808
    %v101 = vunpack.c.0.s8 %v100
    %v102 = vlaneseq
    %v103 = vshrl.u32 %v102, 7
    %v104 = vsub.s32 %v101, %v103
    %v105 = vrot.slane %v77, %v104
    %v107 = vunpack.c.l.s4 1983009808
    %v108 = vunpack.c.0.s8 %v107
    %v109 = vlaneseq
    %v110 = vshrl.u32 %v109, 7
    %v111 = vsub.s32 %v108, %v110
    %v112 = vrot.slane %v98, %v111
    %v113 = vcombine.high %v105, %v105
    %v114 = vcombine.high %v112, %v112
    %vm123 = vcmask 1041408
    %v124 = vsel %vm123, %v88, 0.0
    %v125 = vsel %vm123, %v96, 0.0
    %v126 = vadd.f32 %v124, %v125
    %v127 = vsel %vm123, %v95, 0.0
    %v128 = vadd.f32 %v126, %v127
    %v129 = vsel %vm123, %v97, 0.0
    %v130 = vadd.f32 %v128, %v129
    %v131 = vsel %vm123, %v105, 0.0
    %v132 = vadd.f32 %v130, %v131
    %v133 = vsel %vm123, %v113, 0.0
    %v134 = vadd.f32 %v132, %v133
    %v135 = vsel %vm123, %v112, 0.0
    %v136 = vadd.f32 %v134, %v135
    %v137 = vsel %vm123, %v114, 0.0
    %v138 = vadd.f32 %v136, %v137
    %139 = vadd.xlane.f32.xlu0 %v138
    %v140 = vpop.xlane.xlu0 %139
    %v141 = vrot.slane %v140, 4
    %v142 = vadd.f32 %v140, %v141
    %v143 = vrot.slane %v142, 2
    %v144 = vadd.f32 %v142, %v143
    %v145 = vrot.slane %v144, 1
    %v146 = vadd.f32 %v144, %v145
    %s147 = vtos %v146
    %s148 = sadd.f32 %s78, %s147
    %s149 = scalar_lea.smem [#allocation2], 0
    %150 = sst [smem:[%s149]] %s148
    // Predicated region
    $region22: #{tpu_custom_call.1} parent=1 // pred_check
      %p151 = pneg %p36
    $region23: #{tpu_custom_call.1} parent=1 // pred_check_branch
      %153 = sbr.rel (%p151) target = $region25
    $region24: #{tpu_custom_call.1} parent=1 // pred_region
      %s154 = sld [smem:[#allocation2]]
      %s155 = scalar_lea.smem [#allocation8], 0
      %156 = sst [smem:[%s155]] %s154
    $region25: #{tpu_custom_call.1} parent=1 // pred_fallthru
      _
    // Predicated region
    $region26: #{tpu_custom_call.1} parent=1 // pred_check
      _
    $region27: #{tpu_custom_call.1} parent=1 // pred_check_branch
      %158 = sbr.rel (0) target = $region29
    $region28: #{tpu_custom_call.1} parent=1 // pred_region
      %s160 = ssub.s32 16, 16
      %161 = vsyncadd [#allocation5], %s160
      %164 = dma.smem_to_hbm [#allocation8], 16, %s2, [#allocation5]
    $region29: #{tpu_custom_call.1} parent=1 // pred_fallthru
      _
    // Predicated region
    $region30: #{tpu_custom_call.1} parent=1 // pred_check
      _
    $region31: #{tpu_custom_call.1} parent=1 // pred_check_branch
      %166 = sbr.rel (0) target = $region33
    $region32: #{tpu_custom_call.1} parent=1 // pred_region
      %167 = dma.done [#allocation5], 16
    $region33: #{tpu_custom_call.1} parent=1 // pred_fallthru
      _
    %168 = sfence
    %169 = vsyncpa [#allocation4], 1
    %170 = vsyncpa [#allocation7], 1
    %171 = vsyncpa [#allocation5], 1

</llo_original>
